<compile_context>
chip_gen: v6e
topology: v6e:2x2x1
jax: 0.10.0
libtpu: 0.0.40
codegen_flags: <defaults>
</compile_context>

<pallas_src>
import jax
import jax.numpy as jnp
from jax.experimental import pallas as pl
from jax.experimental.pallas import tpu as pltpu

_LANE = 128
_SUBLANE = 8


def _round_up(x, m):
    return ((x + m - 1) // m) * m


def _pack_params(w1, b1, w2, b2, w3, b3):
    """Pack all layer params into one lane-aligned f32 slab (kept resident in VMEM).

    b1 is folded into w1 as an extra trailing column (the input gets a matching
    constant-1 row), so layer 1 becomes a single (H1, IN+1) @ (IN+1, TB) matmul.

    Column layout (each segment starts at a multiple of SEG lanes):
      seg 0: w1a = [w1 | b1]  (H1, IN+1)
      seg 1: w2               (H2, H1)
      seg 2: b2               (H2, 1)
      seg 3: w3               (OUT, H2)
      seg 4: b3               (OUT, 1)
    """
    H1, IN = w1.shape
    H2, _ = w2.shape
    OUT, _ = w3.shape
    IN1 = IN + 1
    SEG = _round_up(max(IN1, H1, H2, 1), _LANE)
    R = _round_up(max(H1, H2, OUT), _SUBLANE)

    p = jnp.zeros((R, 5 * SEG), jnp.float32)
    p = p.at[:H1, 0:IN].set(w1.astype(jnp.float32))
    p = p.at[:H1, IN:IN1].set(b1.reshape(H1, 1).astype(jnp.float32))
    p = p.at[:H2, SEG:SEG + H1].set(w2.astype(jnp.float32))
    p = p.at[:H2, 2 * SEG:2 * SEG + 1].set(b2.reshape(H2, 1).astype(jnp.float32))
    p = p.at[:OUT, 3 * SEG:3 * SEG + H2].set(w3.astype(jnp.float32))
    p = p.at[:OUT, 4 * SEG:4 * SEG + 1].set(b3.reshape(OUT, 1).astype(jnp.float32))
    return p, SEG, IN1


def _make_kernel(IN1, H1, H2, OUT, SEG, act_dtype):
    def act(fn, v):
        if act_dtype == jnp.float32:
            return fn(v)
        # Optional bf16 EUP path (v6e/v7x only); matmul accumulation stays f32.
        return fn(v.astype(act_dtype)).astype(jnp.float32)

    def kernel(p_ref, x_ref, o_ref):
        # x_ref: (IN1, TB), feature-major (batch on the lane axis, lane-dense
        # activations and stores).  Last row is the constant-1 row (b1 fold).
        x = x_ref[...]

        # Static slices into the resident packed parameter slab.
        w1 = p_ref[0:H1, 0:IN1]                       # [w1 | b1]
        w2 = p_ref[0:H2, SEG:SEG + H1]
        b2 = p_ref[0:H2, 2 * SEG:2 * SEG + 1]
        w3 = p_ref[0:OUT, 3 * SEG:3 * SEG + H2]
        b3 = p_ref[0:OUT, 4 * SEG:4 * SEG + 1]

        h1 = act(jnp.tanh, jnp.dot(w1, x, preferred_element_type=jnp.float32))
        h2 = act(jnp.tanh, jnp.dot(w2, h1, preferred_element_type=jnp.float32) + b2)
        z = jnp.dot(w3, h2, preferred_element_type=jnp.float32) + b3
        o_ref[...] = act(jax.nn.sigmoid, z)

    return kernel


def _choose_tb(B, block_b, IN1, H1, H2, OUT):
    """Pick the batch tile: big (amortize ~0.35us/step), VMEM-safe, >=2-4 grid steps."""
    def su(n):
        return _round_up(max(int(n), 1), _SUBLANE)

    # Per-column f32 VMEM estimate: double-buffered x and out tiles + h1/h2/z
    # intermediates, with 50% headroom for compiler temporaries.
    bytes_per_col = 4 * (2 * su(IN1) + 3 * su(OUT) + su(H1) + su(H2))
    bytes_per_col = int(bytes_per_col * 1.5) + 4
    vmem_budget = 12 * 1024 * 1024          # safe under v5e's 16 MiB default scoped-VMEM
    tb_vmem = max(_LANE, (vmem_budget // bytes_per_col) // _LANE * _LANE)
    tb_cap = max(_LANE, (int(block_b) // _LANE) * _LANE)
    TB = min(_round_up(B, _LANE), tb_cap, tb_vmem)

    # Guarantee >=2 (ideally >=4) grid steps when the batch allows it, so the
    # single "parallel" axis can be split across both v7x TensorCores and the
    # pipeline gets at least one step of prefetch overlap.
    if B >= 4 * _LANE:
        min_steps = 4
    elif B >= 2 * _LANE:
        min_steps = 2
    else:
        min_steps = 1
    TB = min(TB, _round_up(-(-B // min_steps), _LANE))
    return TB


def _forward_aug(x_aug, w1, b1, w2, b2, w3, b3, *, block_b, activation_dtype):
    """Core pallas call on an augmented feature-major input x_aug: (IN+1, B)."""
    IN1, B = x_aug.shape
    H1 = w1.shape[0]
    H2 = w2.shape[0]
    OUT = w3.shape[0]

    packed, SEG, _ = _pack_params(w1, b1, w2, b2, w3, b3)
    TB = _choose_tb(B, block_b, IN1, H1, H2, OUT)
    grid_b = pl.cdiv(B, TB)
    kernel = _make_kernel(IN1, H1, H2, OUT, SEG, activation_dtype)

    def call(single_buffer_params):
        if single_buffer_params:
            # Constant index_map -> the block is revisited every step; a second
            # buffer is useless, so single-buffer the resident parameter slab.
            p_spec = pl.BlockSpec(packed.shape, lambda i: (0, 0),
                                  pipeline_mode=pl.Buffered(1))
        else:
            p_spec = pl.BlockSpec(packed.shape, lambda i: (0, 0))
        return pl.pallas_call(
            kernel,
            out_shape=jax.ShapeDtypeStruct((OUT, B), jnp.float32),
            grid=(grid_b,),
            in_specs=[
                p_spec,
                # x tile: full (augmented) feature dim, TB batch columns per step.
                # The ragged last tile relies on Pallas partial-block masking.
                pl.BlockSpec((IN1, TB), lambda i: (0, i)),
            ],
            out_specs=pl.BlockSpec((OUT, TB), lambda i: (0, i)),
            compiler_params=pltpu.CompilerParams(
                dimension_semantics=("parallel",),
                vmem_limit_bytes=32 * 1024 * 1024,
            ),
        )(packed, x_aug)

    try:
        return call(True)
    except Exception:
        # Some JAX/Mosaic versions may reject pl.Buffered(1); fall back to default.
        return call(False)


def lj7_2_forward_fm(x_fm, w1, b1, w2, b2, w3, b3, *, block_b=32768,
                     activation_dtype=jnp.float32):
    """Feature-major forward: x_fm is (in_size, B) -> (out_size, B).

    Preferred entry point when the caller keeps activations feature-major: the
    only wrapper-side layout pass is appending the constant-1 row (b1 fold).
    """
    x_fm = jnp.asarray(x_fm, jnp.float32)
    _, B = x_fm.shape
    x_aug = jnp.concatenate([x_fm, jnp.ones((1, B), jnp.float32)], axis=0)
    return _forward_aug(x_aug, w1, b1, w2, b2, w3, b3,
                        block_b=block_b, activation_dtype=activation_dtype)


def lj7_2_forward(x, w1, b1, w2, b2, w3, b3, *, block_b=32768,
                  activation_dtype=jnp.float32):
    """Batch-major forward matching the PyTorch module.

    x  : (B, in_size)
    w1 : (hidden,  in_size),  b1 : (hidden,)
    w2 : (hidden2, hidden),   b2 : (hidden2,)
    w3 : (out,     hidden2),  b3 : (out,)
    returns (B, out_size)
    """
    x = jnp.asarray(x, jnp.float32)
    B, _ = x.shape
    # Single fused layout pass: transpose to feature-major AND append the
    # constant-1 row used for the b1 fold.  No zero-padded slab is built.
    x_aug = jnp.concatenate([x.T, jnp.ones((1, B), jnp.float32)], axis=0)
    out_fm = _forward_aug(x_aug, w1, b1, w2, b2, w3, b3,
                          block_b=block_b, activation_dtype=activation_dtype)
    return out_fm.T


def init_params(key, in_size, hidden, hidden2, out_size):
    """Deterministic init mimicking nn.Linear's U(-1/sqrt(fan_in), 1/sqrt(fan_in)).

    Returns PyTorch-layout params: w (fan_out, fan_in), b (fan_out,).
    """
    ks = jax.random.split(key, 6)

    def lin(kw, kb, fan_in, fan_out):
        bound = 1.0 / jnp.sqrt(jnp.float32(fan_in))
        w = jax.random.uniform(kw, (fan_out, fan_in), jnp.float32, -bound, bound)
        b = jax.random.uniform(kb, (fan_out,), jnp.float32, -bound, bound)
        return w, b

    w1, b1 = lin(ks[0], ks[1], in_size, hidden)
    w2, b2 = lin(ks[2], ks[3], hidden, hidden2)
    w3, b3 = lin(ks[4], ks[5], hidden2, out_size)
    return w1, b1, w2, b2, w3, b3


if __name__ == "__main__":
    # LJ7 CV-learning shapes: in_size=7 (sorted coordination numbers of 7 LJ atoms),
    # hidden=32, hidden2=16, out_size=2 collective variables.
    IN, H1, H2, OUT = 7, 32, 16, 2
    B = 200  # not a multiple of 128 -> exercises the ragged tail + a 2-step grid

    key = jax.random.PRNGKey(0)
    kx, kp = jax.random.split(key)
    x = jax.random.normal(kx, (B, IN), jnp.float32)
    w1, b1, w2, b2, w3, b3 = init_params(kp, IN, H1, H2, OUT)

    # Small tile for the demo so the grid has 2 steps and a masked partial block.
    out = lj7_2_forward(x, w1, b1, w2, b2, w3, b3, block_b=128)
    out = jax.block_until_ready(out)

    # Plain-JAX reference of the same math (PyTorch Linear: x @ W.T + b).
    ref = jax.nn.sigmoid(
        jnp.tanh(jnp.tanh(x @ w1.T + b1) @ w2.T + b2) @ w3.T + b3
    )
    assert out.shape == (B, OUT)
    assert jnp.allclose(out, ref, atol=1e-5, rtol=1e-5)

    print("KERNEL_OK")
</pallas_src>

<mosaic_0001>
module attributes {stable_mosaic.version = 11 : i64} {
  func.func @kernel(%arg0: i32, %arg1: memref<32x640xf32, #tpu.memory_space<vmem>>, %arg2: memref<8x128xf32, #tpu.memory_space<vmem>>, %arg3: memref<2x128xf32, #tpu.memory_space<vmem>>) attributes {dimension_semantics = [#tpu.dimension_semantics<parallel>], iteration_bounds = array<i64: 2>, scalar_prefetch = 0 : i64, scratch_operands = 0 : i64, tpu.core_type = #tpu.core_type<tc>, window_params = [{pipeline_mode = #tpu.pipeline_mode<synchronous>, transform_indices = @transform_0, window_bounds = array<i64: 32, 640>}, {transform_indices = @transform_1, window_bounds = array<i64: 8, 128>}, {transform_indices = @transform_2, window_bounds = array<i64: 2, 128>}]} {
    %c0 = arith.constant 0 : index
    %c0_0 = arith.constant 0 : index
    %0 = vector.load %arg2[%c0, %c0_0] : memref<8x128xf32, #tpu.memory_space<vmem>>, vector<8x128xf32>
    %c0_1 = arith.constant 0 : index
    %c0_2 = arith.constant 0 : index
    %1 = vector.load %arg1[%c0_1, %c0_2] : memref<32x640xf32, #tpu.memory_space<vmem>>, vector<32x8xf32>
    %c0_3 = arith.constant 0 : index
    %c128 = arith.constant 128 : index
    %2 = vector.load %arg1[%c0_3, %c128] : memref<32x640xf32, #tpu.memory_space<vmem>>, vector<16x32xf32>
    %c0_4 = arith.constant 0 : index
    %c256 = arith.constant 256 : index
    %3 = vector.load %arg1[%c0_4, %c256] : memref<32x640xf32, #tpu.memory_space<vmem>>, vector<16x1xf32>
    %c0_5 = arith.constant 0 : index
    %c384 = arith.constant 384 : index
    %4 = vector.load %arg1[%c0_5, %c384] : memref<32x640xf32, #tpu.memory_space<vmem>>, vector<2x16xf32>
    %c0_6 = arith.constant 0 : index
    %c512 = arith.constant 512 : index
    %5 = vector.load %arg1[%c0_6, %c512] : memref<32x640xf32, #tpu.memory_space<vmem>>, vector<2x1xf32>
    %cst = arith.constant dense<0.000000e+00> : vector<32x128xf32>
    %6 = tpu.matmul %1, %0, %cst {dimension_numbers = #tpu.dot_dimension_numbers<[1], [0], [0], [1], [0, 0, 1, 1], [], []>} : vector<32x8xf32>, vector<8x128xf32>, vector<32x128xf32> -> vector<32x128xf32>
    %7 = math.tanh %6 : vector<32x128xf32>
    %cst_7 = arith.constant dense<0.000000e+00> : vector<16x128xf32>
    %8 = tpu.matmul %2, %7, %cst_7 {dimension_numbers = #tpu.dot_dimension_numbers<[1], [0], [0], [1], [0, 0, 1, 1], [], []>} : vector<16x32xf32>, vector<32x128xf32>, vector<16x128xf32> -> vector<16x128xf32>
    %9 = vector.broadcast %3 : vector<16x1xf32> to vector<16x128xf32>
    %10 = arith.addf %8, %9 : vector<16x128xf32>
    %11 = math.tanh %10 : vector<16x128xf32>
    %cst_8 = arith.constant dense<0.000000e+00> : vector<2x128xf32>
    %12 = tpu.matmul %4, %11, %cst_8 {dimension_numbers = #tpu.dot_dimension_numbers<[1], [0], [0], [1], [0, 0, 1, 1], [], []>} : vector<2x16xf32>, vector<16x128xf32>, vector<2x128xf32> -> vector<2x128xf32>
    %13 = vector.broadcast %5 : vector<2x1xf32> to vector<2x128xf32>
    %14 = arith.addf %12, %13 : vector<2x128xf32>
    %15 = arith.negf %14 : vector<2x128xf32>
    %16 = math.exp %15 : vector<2x128xf32>
    %cst_9 = arith.constant 1.000000e+00 : f32
    %17 = vector.broadcast %cst_9 : f32 to vector<2x128xf32>
    %18 = arith.addf %17, %16 : vector<2x128xf32>
    %19 = arith.divf %17, %18 : vector<2x128xf32>
    %c0_10 = arith.constant 0 : index
    %c0_11 = arith.constant 0 : index
    %20 = vector.load %arg3[%c0_10, %c0_11] : memref<2x128xf32, #tpu.memory_space<vmem>>, vector<2x128xf32>
    tpu.vector_store %arg3[%c0_10, %c0_11], %19 {strides = array<i32>} : memref<2x128xf32, #tpu.memory_space<vmem>>, vector<2x128xf32>,
    return
  }
  func.func @transform_0(%arg0: i32) -> (i32, i32) {
    %c0_i32 = arith.constant 0 : i32
    %c0_i32_0 = arith.constant 0 : i32
    %c0_i32_1 = arith.constant 0 : i32
    return %c0_i32, %c0_i32_0 : i32, i32
  }
  func.func @transform_1(%arg0: i32) -> (i32, i32) {
    %c0_i32 = arith.constant 0 : i32
    %c0_i32_0 = arith.constant 0 : i32
    return %c0_i32, %arg0 : i32, i32
  }
  func.func @transform_2(%arg0: i32) -> (i32, i32) {
    %c0_i32 = arith.constant 0 : i32
    %c0_i32_0 = arith.constant 0 : i32
    return %c0_i32, %arg0 : i32, i32
  }
}

module attributes {stable_mosaic.version = 11 : i64} {
  func.func @kernel(%arg0: i32, %arg1: memref<32x640xf32, #tpu.memory_space<vmem>>, %arg2: memref<8x128xf32, #tpu.memory_space<vmem>>, %arg3: memref<2x128xf32, #tpu.memory_space<vmem>>) attributes {dimension_semantics = [#tpu.dimension_semantics<parallel>], iteration_bounds = array<i64: 2>, scalar_prefetch = 0 : i64, scratch_operands = 0 : i64, tpu.core_type = #tpu.core_type<tc>, window_params = [{pipeline_mode = #tpu.pipeline_mode<synchronous>, transform_indices = @transform_0, window_bounds = array<i64: 32, 640>}, {transform_indices = @transform_1, window_bounds = array<i64: 8, 128>}, {transform_indices = @transform_2, window_bounds = array<i64: 2, 128>}]} {
    %c0 = arith.constant 0 : index
    %c0_0 = arith.constant 0 : index
    %0 = vector.load %arg2[%c0, %c0_0] : memref<8x128xf32, #tpu.memory_space<vmem>>, vector<8x128xf32>
    %c0_1 = arith.constant 0 : index
    %c0_2 = arith.constant 0 : index
    %1 = vector.load %arg1[%c0_1, %c0_2] : memref<32x640xf32, #tpu.memory_space<vmem>>, vector<32x8xf32>
    %c0_3 = arith.constant 0 : index
    %c128 = arith.constant 128 : index
    %2 = vector.load %arg1[%c0_3, %c128] : memref<32x640xf32, #tpu.memory_space<vmem>>, vector<16x32xf32>
    %c0_4 = arith.constant 0 : index
    %c256 = arith.constant 256 : index
    %3 = vector.load %arg1[%c0_4, %c256] : memref<32x640xf32, #tpu.memory_space<vmem>>, vector<16x1xf32>
    %c0_5 = arith.constant 0 : index
    %c384 = arith.constant 384 : index
    %4 = vector.load %arg1[%c0_5, %c384] : memref<32x640xf32, #tpu.memory_space<vmem>>, vector<2x16xf32>
    %c0_6 = arith.constant 0 : index
    %c512 = arith.constant 512 : index
    %5 = vector.load %arg1[%c0_6, %c512] : memref<32x640xf32, #tpu.memory_space<vmem>>, vector<2x1xf32>
    %cst = arith.constant dense<0.000000e+00> : vector<32x128xf32>
    %6 = tpu.matmul %1, %0, %cst {dimension_numbers = #tpu.dot_dimension_numbers<[1], [0], [0], [1], [0, 0, 1, 1], [], []>} : vector<32x8xf32>, vector<8x128xf32>, vector<32x128xf32> -> vector<32x128xf32>
    %7 = math.tanh %6 : vector<32x128xf32>
    %cst_7 = arith.constant dense<0.000000e+00> : vector<16x128xf32>
    %8 = tpu.matmul %2, %7, %cst_7 {dimension_numbers = #tpu.dot_dimension_numbers<[1], [0], [0], [1], [0, 0, 1, 1], [], []>} : vector<16x32xf32>, vector<32x128xf32>, vector<16x128xf32> -> vector<16x128xf32>
    %9 = vector.broadcast %3 : vector<16x1xf32> to vector<16x128xf32>
    %10 = arith.addf %8, %9 : vector<16x128xf32>
    %11 = math.tanh %10 : vector<16x128xf32>
    %cst_8 = arith.constant dense<0.000000e+00> : vector<2x128xf32>
    %12 = tpu.matmul %4, %11, %cst_8 {dimension_numbers = #tpu.dot_dimension_numbers<[1], [0], [0], [1], [0, 0, 1, 1], [], []>} : vector<2x16xf32>, vector<16x128xf32>, vector<2x128xf32> -> vector<2x128xf32>
    %13 = vector.broadcast %5 : vector<2x1xf32> to vector<2x128xf32>
    %14 = arith.addf %12, %13 : vector<2x128xf32>
    %15 = arith.negf %14 : vector<2x128xf32>
    %16 = math.exp %15 : vector<2x128xf32>
    %cst_9 = arith.constant 1.000000e+00 : f32
    %17 = vector.broadcast %cst_9 : f32 to vector<2x128xf32>
    %18 = arith.addf %17, %16 : vector<2x128xf32>
    %19 = arith.divf %17, %18 : vector<2x128xf32>
    %c0_10 = arith.constant 0 : index
    %c0_11 = arith.constant 0 : index
    %20 = vector.load %arg3[%c0_10, %c0_11] : memref<2x128xf32, #tpu.memory_space<vmem>>, vector<2x128xf32>
    tpu.vector_store %arg3[%c0_10, %c0_11], %19 {strides = array<i32>} : memref<2x128xf32, #tpu.memory_space<vmem>>, vector<2x128xf32>,
    return
  }
  func.func @transform_0(%arg0: i32) -> (i32, i32) {
    %c0_i32 = arith.constant 0 : i32
    %c0_i32_0 = arith.constant 0 : i32
    %c0_i32_1 = arith.constant 0 : i32
    return %c0_i32, %c0_i32_0 : i32, i32
  }
  func.func @transform_1(%arg0: i32) -> (i32, i32) {
    %c0_i32 = arith.constant 0 : i32
    %c0_i32_0 = arith.constant 0 : i32
    return %c0_i32, %arg0 : i32, i32
  }
  func.func @transform_2(%arg0: i32) -> (i32, i32) {
    %c0_i32 = arith.constant 0 : i32
    %c0_i32_0 = arith.constant 0 : i32
    return %c0_i32, %arg0 : i32, i32
  }
}

</mosaic_0001>

<llo_original>
// kernel: tpu_custom_call.1
$region0: #{tpu_custom_call.1}
  #allocation0 [shape = 'u32[]', space=smem, size = 0x4, offset = 0x4, fixed_abs, tag = 'smem constant byte address 0x4 - core index']
  #allocation1 [shape = 'u32[144,128]{1,0:T(1,128)}', space=vmem, size = 0x12000, scoped, tag = 'internal scratch']
  %s0 = inlined_call_operand.hbm [shape: f32[32,640], index: 0, kind: input, shape index: {}]
  %s1 = inlined_call_operand.hbm [shape: f32[8,200], index: 1, kind: input, shape index: {}]
  %s2 = inlined_call_operand.hbm [shape: f32[2,200], index: 2, kind: output, shape index: {}]
  %s3 = sld [smem:[#allocation0]]
  $region49: #{tpu_custom_call.1} parent=0
    _
  %s5 = ssub.s32 1, %s3
  %s6 = scalar_select 0, %s5, %s3
  $region1: #{tpu_custom_call.1} parent=0
    #allocation2 [shape = 'u8[81920]{0}', space=vmem, size = 0x14000, scoped, tag = 'input window, operand 0, single buffered']
    #allocation3 [shape = 's32[2]{0}', space=sflag, size = 0x8, scoped, tag = 'scoped memory for tpu_custom_call.1']
    #allocation4 [shape = 's32[2]{0}', space=sflag, size = 0x8, scoped, tag = 'scoped memory for tpu_custom_call.1']
    #allocation5 [shape = 'u8[8192]{0}', space=vmem, size = 0x2000, scoped, tag = 'input window, operand 1']
    #allocation6 [shape = 's32[2]{0}', space=sflag, size = 0x8, scoped, tag = 'scoped memory for tpu_custom_call.1']
    #allocation7 [shape = 'u8[2048]{0}', space=vmem, size = 0x800, scoped, tag = 'output window, operand 0']
    %7 = vsyncpa [#allocation3], 0
    %8 = vsyncpa [#allocation6], 0
    %s9 = scalar_lea.sflag [#allocation6], 1
    %10 = vsyncpa %s9, 0
    %11 = vsyncpa [#allocation4], 0
    %s12 = scalar_lea.sflag [#allocation4], 1
    %13 = vsyncpa %s12, 0
    loop: start=0, step=1, limit=4
    $region2: #{tpu_custom_call.1} parent=1 // loop_pre_header
      _
    $region3: #{tpu_custom_call.1} parent=1 // loop_header
      %s15 = sphi 0, %s19
      %p16 = scmp.ge.s32.totalorder %s15, 4
      %s23 = sphi 0, %s23
      %s25 = sphi 0, %s23
      %s26 = sphi 0, %s25
      %s40 = sphi 0, %s26
      %s46 = sphi 0, %s48
      %s49 = sphi 0, %s46
      %s50 = sphi 0, %s49
      %s66 = sphi 0, %s50
      %s72 = sphi 0, %s74
      %s75 = sphi 0, %s72
      %s76 = sphi 0, %s75
      %s92 = sphi 0, %s76
    $region4: #{tpu_custom_call.1} parent=1 // loop_header_branch
      %18 = sbr.rel (%p16) target = $region8
    $region5: #{tpu_custom_call.1} parent=1 // loop_body
      %s20 = ssub.s32 %s15, 1
      %s21 = ssub.s32 %s15, 2
      %s22 = sadd.s32 %s15, 1
      %s24 = sadd.s32 %s23, 1
      %p27 = scmp.eq.s32.totalorder %s15, 1
      %p28 = scmp.ne.s32.totalorder %s23, %s25
      %p29 = scmp.eq.s32.totalorder %s15, 0
      %p30 = por %p28, %p29
      %p31 = scmp.ne.s32.totalorder %s23, %s25
      %p32 = scmp.eq.s32.totalorder %s20, 1
      %p33 = por %p31, %p32
      %p34 = scmp.ne.s32.totalorder %s25, %s26
      %p35 = scmp.eq.s32.totalorder %s20, 0
      %p36 = por %p34, %p35
      %p37 = scmp.ne.s32.totalorder %s25, %s26
      %p38 = scmp.eq.s32.totalorder %s21, 1
      %p39 = por %p37, %p38
      %p41 = scmp.ne.s32.totalorder %s26, %s40
      %p42 = scmp.eq.s32.totalorder %s21, 0
      %p43 = por %p41, %p42
      %s44 = ssub.s32 %s15, %s22
      %p45 = scmp.eq.s32.totalorder %s44, 0
      %s47 = sadd.s32 %s46, 1
      %s48 = scalar_select %p45, %s46, %s47
      %p51 = pneg %p45
      %p52 = scmp.eq.s32.totalorder %s15, 1
      %p53 = por %p51, %p52
      %p54 = scmp.ne.s32.totalorder %s46, %s49
      %p55 = scmp.eq.s32.totalorder %s15, 0
      %p56 = por %p54, %p55
      %p57 = scmp.ne.s32.totalorder %s46, %s49
      %p58 = scmp.eq.s32.totalorder %s20, 1
      %p59 = por %p57, %p58
      %p60 = scmp.ne.s32.totalorder %s49, %s50
      %p61 = scmp.eq.s32.totalorder %s20, 0
      %p62 = por %p60, %p61
      %p63 = scmp.ne.s32.totalorder %s49, %s50
      %p64 = scmp.eq.s32.totalorder %s21, 1
      %p65 = por %p63, %p64
      %p67 = scmp.ne.s32.totalorder %s50, %s66
      %p68 = scmp.eq.s32.totalorder %s21, 0
      %p69 = por %p67, %p68
      %s70 = ssub.s32 %s15, %s22
      %p71 = scmp.eq.s32.totalorder %s70, 0
      %s73 = sadd.s32 %s72, 1
      %s74 = scalar_select %p71, %s72, %s73
      %p77 = pneg %p71
      %p78 = scmp.eq.s32.totalorder %s15, 1
      %p79 = por %p77, %p78
      %p80 = scmp.ne.s32.totalorder %s72, %s75
      %p81 = scmp.eq.s32.totalorder %s15, 0
      %p82 = por %p80, %p81
      %p83 = scmp.ne.s32.totalorder %s72, %s75
      %p84 = scmp.eq.s32.totalorder %s20, 1
      %p85 = por %p83, %p84
      %p86 = scmp.ne.s32.totalorder %s75, %s76
      %p87 = scmp.eq.s32.totalorder %s20, 0
      %p88 = por %p86, %p87
      %p89 = scmp.ne.s32.totalorder %s75, %s76
      %p90 = scmp.eq.s32.totalorder %s21, 1
      %p91 = por %p89, %p90
      %p93 = scmp.ne.s32.totalorder %s76, %s92
      %p94 = scmp.eq.s32.totalorder %s21, 0
      %p95 = por %p93, %p94
      %p96 = scmp.le.s32.totalorder 1, %s15
      %p97 = scmp.lt.s32.totalorder %s15, 3
      %p98 = pnand %p96, %p97
      %p99 = pneg %p98
      // Predicated region
      $region9: #{tpu_custom_call.1} parent=5 // pred_check
        _
      $region10: #{tpu_custom_call.1} parent=5 // pred_check_branch
        %101 = sbr.rel (%p98) target = $region12
      $region11: #{tpu_custom_call.1} parent=5 // pred_region
        %s102 = ssub.s32 %s15, 1
        // Predicated region
        $region13: #{tpu_custom_call.1} parent=11 // pred_check
          %p103 = pneg %p36
        $region14: #{tpu_custom_call.1} parent=11 // pred_check_branch
          %105 = sbr.rel (%p103) target = $region16
        $region15: #{tpu_custom_call.1} parent=11 // pred_region
          %s107 = ssub.s32 2560, 2560
          %108 = vsyncadd [#allocation3], %s107
          %s109 = sshll.u32 [#allocation2], 4
          %s110 = int_to_ptr.vmem [resolvable:$true] %s109
          %115 = dma.hbm_to_vmem [thread:$0]  %s0, 2560, %s110, [#allocation3], 640, 640, 40
        $region16: #{tpu_custom_call.1} parent=11 // pred_fallthru
          _
      $region12: #{tpu_custom_call.1} parent=5 // pred_fallthru
        _
      %p116 = scmp.lt.s32.totalorder %s15, 2
      // Predicated region
      $region17: #{tpu_custom_call.1} parent=5 // pred_check
        %p117 = pneg %p116
      $region18: #{tpu_custom_call.1} parent=5 // pred_check_branch
        %119 = sbr.rel (%p117) target = $region20
      $region19: #{tpu_custom_call.1} parent=5 // pred_region
        // Predicated region
        $region21: #{tpu_custom_call.1} parent=19 // pred_check
          %p120 = pneg %p56
        $region22: #{tpu_custom_call.1} parent=19 // pred_check_branch
          %122 = sbr.rel (%p120) target = $region24
        $region23: #{tpu_custom_call.1} parent=19 // pred_region
          %s123 = sand.u32 %s46, 1
          %s124 = scalar_lea.sflag [#allocation6], %s123
          %s125 = sand.u32 %s46, 1
          %s126 = smul.addr %s125, 8
          %s127 = scalar_lea.vmem [#allocation5], %s126
          %s129 = ssub.s32 128, 128
          %130 = vsyncadd %s124, %s129
          %s131 = smul.addr %s15, 128
          %s132 = scalar_lea.hbm %s1, %s131
          %s134 = sshll.u32 %s127, 4
          %s135 = int_to_ptr.vmem [resolvable:$true] %s134
          %137 = dma.hbm_to_vmem [thread:$0]  %s132, 128, %s135, %s124
        $region24: #{tpu_custom_call.1} parent=19 // pred_fallthru
          _
      $region20: #{tpu_custom_call.1} parent=5 // pred_fallthru
        _
      %p138 = scmp.le.s32.totalorder 1, %s15
      %p139 = scmp.lt.s32.totalorder %s15, 3
      %p140 = pnand %p138, %p139
      %p141 = pneg %p140
      // Predicated region
      $region25: #{tpu_custom_call.1} parent=5 // pred_check
        _
      $region26: #{tpu_custom_call.1} parent=5 // pred_check_branch
        %143 = sbr.rel (%p140) target = $region28
      $region27: #{tpu_custom_call.1} parent=5 // pred_region
        %s144 = ssub.s32 %s15, 1
        // Predicated region
        $region29: #{tpu_custom_call.1} parent=27 // pred_check
          %p145 = pneg %p36
        $region30: #{tpu_custom_call.1} parent=27 // pred_check_branch
          %147 = sbr.rel (%p145) target = $region32
        $region31: #{tpu_custom_call.1} parent=27 // pred_region
          %148 = dma.done [#allocation3], 2560
        $region32: #{tpu_custom_call.1} parent=27 // pred_fallthru
          _
        %s149 = sand.u32 %s49, 1
        %s150 = scalar_lea.sflag [#allocation6], %s149
        %s151 = sand.u32 %s49, 1
        %s152 = smul.addr %s151, 8
        %s153 = scalar_lea.vmem [#allocation5], %s152
        // Predicated region
        $region33: #{tpu_custom_call.1} parent=27 // pred_check
          %p154 = pneg %p62
        $region34: #{tpu_custom_call.1} parent=27 // pred_check_branch
          %156 = sbr.rel (%p154) target = $region36
        $region35: #{tpu_custom_call.1} parent=27 // pred_region
          %157 = dma.done %s150, 128
        $region36: #{tpu_custom_call.1} parent=27 // pred_fallthru
          _
        %p158 = pneg %p36
        %p159 = pneg %p33
        %s160 = sand.u32 %s49, 1
        %s161 = scalar_lea.sflag [#allocation6], %s160
        %s162 = sand.u32 %s49, 1
        %s163 = smul.addr %s162, 8
        %s164 = scalar_lea.vmem [#allocation5], %s163
        %p165 = pneg %p62
        %p166 = pneg %p59
        %p167 = pneg %p88
        %p168 = pneg %p85
        %s169 = sand.u32 %s75, 1
        %s170 = scalar_lea.sflag [#allocation4], %s169
        %s171 = sand.u32 %s75, 1
        %s172 = smul.addr %s171, 2
        %s173 = scalar_lea.vmem [#allocation7], %s172
        %v174 = vld [vmem:[%s153] sm:$0xff]
        %v175 = vld [vmem:[#allocation2] sm:$0xff]
        %v176 = vld [vmem:[#allocation2 + $0x28] sm:$0xff]
        %v177 = vld [vmem:[#allocation2 + $0x50] sm:$0xff]
        %v178 = vld [vmem:[#allocation2 + $0x78] sm:$0xff]
        %v179 = vld [vmem:[#allocation2 + $0x8] sm:$0xff]
        %v180 = vld [vmem:[#allocation2 + $0x30] sm:$0xff]
        %v181 = vld [vmem:[#allocation2 + $0x10] sm:$0xff]
        %v182 = vld [vmem:[#allocation2 + $0x38] sm:$0xff]
        %v183 = vld [vmem:[#allocation2 + $0x18] sm:$0x3]
        %v184 = vld [vmem:[#allocation2 + $0x20] sm:$0x3]
        %vm185 = vcmask 64512
        %v187 = vsel %vm185, %v175, 0
        %v190 = vsel %vm185, %v176, 0
        %v193 = vsel %vm185, %v177, 0
        %v196 = vsel %vm185, %v178, 0
        %198 = vmatprep.subr.mxu0 0.0
        %199 = vmatpush1.msra.mxu0 0.0
        %200 = vmatprep.subr.mxu0 0.0
        %201 = vmatpush1.msra.mxu0 0.0
        %202 = vmatprep.subr.mxu0 0.0
        %203 = vmatpush1.msra.mxu0 0.0
        %204 = vmatprep.subr.mxu0 0.0
        %205 = vmatpush1.msra.mxu0 0.0
        %206 = vmatprep.subr.mxu0 0.0
        %207 = vmatpush1.msra.mxu0 0.0
        %208 = vmatprep.subr.mxu0 0.0
        %209 = vmatpush1.msra.mxu0 0.0
        %210 = vmatprep.subr.mxu0 0.0
        %211 = vmatpush1.msra.mxu0 0.0
        %212 = vmatprep.subr.mxu0 0.0
        %213 = vmatpush1.msra.mxu0 0.0
        %214 = vmatprep.subr.mxu0 0.0
        %215 = vmatpush1.msra.mxu0 0.0
        %216 = vmatprep.subr.mxu0 0.0
        %217 = vmatpush1.msra.mxu0 0.0
        %218 = vmatprep.subr.mxu0 0.0
        %219 = vmatpush1.msra.mxu0 0.0
        %220 = vmatprep.subr.mxu0 0.0
        %221 = vmatpush1.msra.mxu0 0.0
        %222 = vmatprep.subr.mxu0 0.0
        %223 = vmatpush1.msra.mxu0 0.0
        %224 = vmatprep.subr.mxu0 0.0
        %225 = vmatpush1.msra.mxu0 0.0
        %226 = vmatprep.subr.mxu0 0.0
        %227 = vmatpush1.msra.mxu0 0.0
        %228 = vmatprep.subr.mxu0 0.0
        %229 = vmatpush1.msra.mxu0 %v174
        %230 = vmatprep.subr.mxu0 0.0
        %231 = vmatpush2.msra.mxu0 0.0
        %232 = vmatprep.subr.mxu0 0.0
        %233 = vmatpush2.msra.mxu0 0.0
        %234 = vmatprep.subr.mxu0 0.0
        %235 = vmatpush2.msra.mxu0 0.0
        %236 = vmatprep.subr.mxu0 0.0
        %237 = vmatpush2.msra.mxu0 0.0
        %238 = vmatprep.subr.mxu0 0.0
        %239 = vmatpush2.msra.mxu0 0.0
        %240 = vmatprep.subr.mxu0 0.0
        %241 = vmatpush2.msra.mxu0 0.0
        %242 = vmatprep.subr.mxu0 0.0
        %243 = vmatpush2.msra.mxu0 0.0
        %244 = vmatprep.subr.mxu0 0.0
        %245 = vmatpush2.msra.mxu0 0.0
        %246 = vmatprep.subr.mxu0 0.0
        %247 = vmatpush2.msra.mxu0 0.0
        %248 = vmatprep.subr.mxu0 0.0
        %249 = vmatpush2.msra.mxu0 0.0
        %250 = vmatprep.subr.mxu0 0.0
        %251 = vmatpush2.msra.mxu0 0.0
        %252 = vmatprep.subr.mxu0 0.0
        %253 = vmatpush2.msra.mxu0 0.0
        %254 = vmatprep.subr.mxu0 0.0
        %255 = vmatpush2.msra.mxu0 0.0
        %256 = vmatprep.subr.mxu0 0.0
        %257 = vmatpush2.msra.mxu0 0.0
        %258 = vmatprep.subr.mxu0 0.0
        %259 = vmatpush2.msra.mxu0 0.0
        %260 = vmatprep.subr.mxu0 0.0
        %261 = vmatpush2.msra.mxu0 0.0
        %262 = vmatprep.mubr.f32.mxu0 0.0
        %263 = vmatmul.mubr.f32.gmra.mxu0 %v187
        %v264 = vpop.f32.mrf.mxu0
        %v265 = vadd.f32 0.0, %v264
        %v266 = vpop.f32.mrf.mxu0
        %267 = vmatprep.mubr.f32.mxu0 0.0
        %268 = vmatmul.mubr.f32.gmra.mxu0 %v190
        %v269 = vpop.f32.mrf.mxu0
        %v270 = vadd.f32 0.0, %v269
        %v271 = vpop.f32.mrf.mxu0
        %272 = vmatprep.mubr.f32.mxu0 0.0
        %273 = vmatmul.mubr.f32.gmra.mxu0 %v193
        %v274 = vpop.f32.mrf.mxu0
        %v275 = vadd.f32 0.0, %v274
        %v276 = vpop.f32.mrf.mxu0
        %277 = vmatprep.mubr.f32.mxu0 0.0
        %278 = vmatmul.mubr.f32.gmra.mxu0 %v196
        %v279 = vpop.f32.mrf.mxu0
        %v280 = vadd.f32 0.0, %v279
        %v281 = vpop.f32.mrf.mxu0
        %282 = vdwg.mxu0
        %v283 = vtanh.pop %v265
        %v284 = vtanh.pop %v270
        %v285 = vtanh.pop %v275
        %v286 = vtanh.pop %v280
        %288 = vset.pattern.permute.xlu0 0
        %289 = vperm.xlu0 %288, %v181
        %v290 = vpop.permute.xlu0 %289
        %293 = vset.pattern.permute.xlu0 0
        %294 = vperm.xlu0 %293, %v182
        %v295 = vpop.permute.xlu0 %294
        %vm297 = vcmask 261120
        %v299 = vsel %vm297, %v179, 0
        %v302 = vsel %vm297, %v180, 0
        %304 = vmatprep.subr.mxu0 0.0
        %305 = vmatpush1.msra.mxu0 0.0
        %306 = vmatprep.subr.mxu0 0.0
        %307 = vmatpush1.msra.mxu0 0.0
        %308 = vmatprep.subr.mxu0 0.0
        %309 = vmatpush1.msra.mxu0 0.0
        %310 = vmatprep.subr.mxu0 0.0
        %311 = vmatpush1.msra.mxu0 0.0
        %312 = vmatprep.subr.mxu0 0.0
        %313 = vmatpush1.msra.mxu0 0.0
        %314 = vmatprep.subr.mxu0 0.0
        %315 = vmatpush1.msra.mxu0 0.0
        %316 = vmatprep.subr.mxu0 0.0
        %317 = vmatpush1.msra.mxu0 0.0
        %318 = vmatprep.subr.mxu0 0.0
        %319 = vmatpush1.msra.mxu0 0.0
        %320 = vmatprep.subr.mxu0 0.0
        %321 = vmatpush1.msra.mxu0 0.0
        %322 = vmatprep.subr.mxu0 0.0
        %323 = vmatpush1.msra.mxu0 0.0
        %324 = vmatprep.subr.mxu0 0.0
        %325 = vmatpush1.msra.mxu0 0.0
        %326 = vmatprep.subr.mxu0 0.0
        %327 = vmatpush1.msra.mxu0 0.0
        %328 = vmatprep.subr.mxu0 0.0
        %329 = vmatpush1.msra.mxu0 %v286
        %330 = vmatprep.subr.mxu0 0.0
        %331 = vmatpush1.msra.mxu0 %v285
        %332 = vmatprep.subr.mxu0 0.0
        %333 = vmatpush1.msra.mxu0 %v284
        %334 = vmatprep.subr.mxu0 0.0
        %335 = vmatpush1.msra.mxu0 %v283
        %336 = vmatprep.subr.mxu0 0.0
        %337 = vmatpush2.msra.mxu0 0.0
        %338 = vmatprep.subr.mxu0 0.0
        %339 = vmatpush2.msra.mxu0 0.0
        %340 = vmatprep.subr.mxu0 0.0
        %341 = vmatpush2.msra.mxu0 0.0
        %342 = vmatprep.subr.mxu0 0.0
        %343 = vmatpush2.msra.mxu0 0.0
        %344 = vmatprep.subr.mxu0 0.0
        %345 = vmatpush2.msra.mxu0 0.0
        %346 = vmatprep.subr.mxu0 0.0
        %347 = vmatpush2.msra.mxu0 0.0
        %348 = vmatprep.subr.mxu0 0.0
        %349 = vmatpush2.msra.mxu0 0.0
        %350 = vmatprep.subr.mxu0 0.0
        %351 = vmatpush2.msra.mxu0 0.0
        %352 = vmatprep.subr.mxu0 0.0
        %353 = vmatpush2.msra.mxu0 0.0
        %354 = vmatprep.subr.mxu0 0.0
        %355 = vmatpush2.msra.mxu0 0.0
        %356 = vmatprep.subr.mxu0 0.0
        %357 = vmatpush2.msra.mxu0 0.0
        %358 = vmatprep.subr.mxu0 0.0
        %359 = vmatpush2.msra.mxu0 0.0
        %360 = vmatprep.subr.mxu0 0.0
        %361 = vmatpush2.msra.mxu0 0.0
        %362 = vmatprep.subr.mxu0 0.0
        %363 = vmatpush2.msra.mxu0 0.0
        %364 = vmatprep.subr.mxu0 0.0
        %365 = vmatpush2.msra.mxu0 0.0
        %366 = vmatprep.subr.mxu0 0.0
        %367 = vmatpush2.msra.mxu0 0.0
        %368 = vmatprep.mubr.f32.mxu0 0.0
        %369 = vmatmul.mubr.f32.gmra.mxu0 %v299
        %v370 = vpop.f32.mrf.mxu0
        %v371 = vadd.f32 %v290, %v370
        %v372 = vpop.f32.mrf.mxu0
        %373 = vmatprep.mubr.f32.mxu0 0.0
        %374 = vmatmul.mubr.f32.gmra.mxu0 %v302
        %v375 = vpop.f32.mrf.mxu0
        %v376 = vadd.f32 %v295, %v375
        %v377 = vpop.f32.mrf.mxu0
        %378 = vdwg.mxu0
        %v379 = vtanh.pop %v371
        %v380 = vtanh.pop %v376
        %382 = vset.pattern.permute.xlu0 0
        %383 = vperm.xlu0 %382, %v184
        %v384 = vpop.permute.xlu0 %383
        %vm386 = vcmask 130048
        %v388 = vsel %vm386, %v183, 0
        %390 = vmatprep.subr.mxu0 0.0
        %391 = vmatpush1.msra.mxu0 0.0
        %392 = vmatprep.subr.mxu0 0.0
        %393 = vmatpush1.msra.mxu0 0.0
        %394 = vmatprep.subr.mxu0 0.0
        %395 = vmatpush1.msra.mxu0 0.0
        %396 = vmatprep.subr.mxu0 0.0
        %397 = vmatpush1.msra.mxu0 0.0
        %398 = vmatprep.subr.mxu0 0.0
        %399 = vmatpush1.msra.mxu0 0.0
        %400 = vmatprep.subr.mxu0 0.0
        %401 = vmatpush1.msra.mxu0 0.0
        %402 = vmatprep.subr.mxu0 0.0
        %403 = vmatpush1.msra.mxu0 0.0
        %404 = vmatprep.subr.mxu0 0.0
        %405 = vmatpush1.msra.mxu0 0.0
        %406 = vmatprep.subr.mxu0 0.0
        %407 = vmatpush1.msra.mxu0 0.0
        %408 = vmatprep.subr.mxu0 0.0
        %409 = vmatpush1.msra.mxu0 0.0
        %410 = vmatprep.subr.mxu0 0.0
        %411 = vmatpush1.msra.mxu0 0.0
        %412 = vmatprep.subr.mxu0 0.0
        %413 = vmatpush1.msra.mxu0 0.0
        %414 = vmatprep.subr.mxu0 0.0
        %415 = vmatpush1.msra.mxu0 0.0
        %416 = vmatprep.subr.mxu0 0.0
        %417 = vmatpush1.msra.mxu0 0.0
        %418 = vmatprep.subr.mxu0 0.0
        %419 = vmatpush1.msra.mxu0 %v380
        %420 = vmatprep.subr.mxu0 0.0
        %421 = vmatpush1.msra.mxu0 %v379
        %422 = vmatprep.subr.mxu0 0.0
        %423 = vmatpush2.msra.mxu0 0.0
        %424 = vmatprep.subr.mxu0 0.0
        %425 = vmatpush2.msra.mxu0 0.0
        %426 = vmatprep.subr.mxu0 0.0
        %427 = vmatpush2.msra.mxu0 0.0
        %428 = vmatprep.subr.mxu0 0.0
        %429 = vmatpush2.msra.mxu0 0.0
        %430 = vmatprep.subr.mxu0 0.0
        %431 = vmatpush2.msra.mxu0 0.0
        %432 = vmatprep.subr.mxu0 0.0
        %433 = vmatpush2.msra.mxu0 0.0
        %434 = vmatprep.subr.mxu0 0.0
        %435 = vmatpush2.msra.mxu0 0.0
        %436 = vmatprep.subr.mxu0 0.0
        %437 = vmatpush2.msra.mxu0 0.0
        %438 = vmatprep.subr.mxu0 0.0
        %439 = vmatpush2.msra.mxu0 0.0
        %440 = vmatprep.subr.mxu0 0.0
        %441 = vmatpush2.msra.mxu0 0.0
        %442 = vmatprep.subr.mxu0 0.0
        %443 = vmatpush2.msra.mxu0 0.0
        %444 = vmatprep.subr.mxu0 0.0
        %445 = vmatpush2.msra.mxu0 0.0
        %446 = vmatprep.subr.mxu0 0.0
        %447 = vmatpush2.msra.mxu0 0.0
        %448 = vmatprep.subr.mxu0 0.0
        %449 = vmatpush2.msra.mxu0 0.0
        %450 = vmatprep.subr.mxu0 0.0
        %451 = vmatpush2.msra.mxu0 0.0
        %452 = vmatprep.subr.mxu0 0.0
        %453 = vmatpush2.msra.mxu0 0.0
        %454 = vmatprep.mubr.f32.mxu0 0.0
        %455 = vmatmul.mubr.f32.gmra.mxu0 %v388
        %v456 = vpop.f32.mrf.mxu0
        %v457 = vadd.f32 %v384, %v456
        %v458 = vpop.f32.mrf.mxu0
        %459 = vdwg.mxu0
        %v460 = vxor.u32 %v457, 2147483648
        %v461 = vmul.f32 %v460, 1.442695
        %v462 = vpow.pop %v461
        %v463 = vadd.f32 %v462, 1.0
        %v464 = vrcp.pop %v463
        %v465 = vmul.f32 1.0, %v464
        %466 = vst [vmem:[%s173] sm:$0x3] %v465
        %s467 = sand.u32 %s75, 1
        %s468 = scalar_lea.sflag [#allocation4], %s467
        %s469 = sand.u32 %s75, 1
        %s470 = smul.addr %s469, 2
        %s471 = scalar_lea.vmem [#allocation7], %s470
        // Predicated region
        $region37: #{tpu_custom_call.1} parent=27 // pred_check
          %p472 = pneg %p85
        $region38: #{tpu_custom_call.1} parent=27 // pred_check_branch
          %474 = sbr.rel (%p472) target = $region40
        $region39: #{tpu_custom_call.1} parent=27 // pred_region
          %s476 = ssub.s32 32, 32
          %477 = vsyncadd %s468, %s476
          %s478 = smul.addr %s20, 32
          %s479 = scalar_lea.hbm %s2, %s478
          %s481 = sshll.u32 %s471, 4
          %s482 = int_to_ptr.vmem [resolvable:$true] %s481
          %484 = dma.vmem_to_hbm [thread:$0]  %s482, 32, %s479, %s468
        $region40: #{tpu_custom_call.1} parent=27 // pred_fallthru
          _
      $region28: #{tpu_custom_call.1} parent=5 // pred_fallthru
        _
      %p485 = scmp.le.s32.totalorder 2, %s15
      // Predicated region
      $region41: #{tpu_custom_call.1} parent=5 // pred_check
        %p486 = pneg %p485
      $region42: #{tpu_custom_call.1} parent=5 // pred_check_branch
        %488 = sbr.rel (%p486) target = $region44
      $region43: #{tpu_custom_call.1} parent=5 // pred_region
        %s489 = ssub.s32 %s15, 2
        // Predicated region
        $region45: #{tpu_custom_call.1} parent=43 // pred_check
          %p490 = pneg %p91
        $region46: #{tpu_custom_call.1} parent=43 // pred_check_branch
          %492 = sbr.rel (%p490) target = $region48
        $region47: #{tpu_custom_call.1} parent=43 // pred_region
          %s493 = sand.u32 %s76, 1
          %s494 = scalar_lea.sflag [#allocation4], %s493
          %s495 = sand.u32 %s76, 1
          %s496 = smul.addr %s495, 2
          %s497 = scalar_lea.vmem [#allocation7], %s496
          %498 = dma.done %s494, 32
        $region48: #{tpu_custom_call.1} parent=43 // pred_fallthru
          _
      $region44: #{tpu_custom_call.1} parent=5 // pred_fallthru
        _
    $region6: #{tpu_custom_call.1} parent=1 // loop_footer
      %s19 = sadd.s32 1, %s15
    $region7: #{tpu_custom_call.1} parent=1 // loop_footer_branch
      %14 = sbr.rel target = $region3
    $region8: #{tpu_custom_call.1} parent=1 // loop_exit
      _
    %499 = vsyncpa [#allocation3], 1
    %s500 = scalar_lea.sflag [#allocation3], 1
    %501 = vsyncpa %s500, 1
    %502 = vsyncpa [#allocation6], 1
    %s503 = scalar_lea.sflag [#allocation6], 1
    %504 = vsyncpa %s503, 1
    %505 = vsyncpa [#allocation4], 1
    %s506 = scalar_lea.sflag [#allocation4], 1
    %507 = vsyncpa %s506, 1

// kernel: tpu_custom_call.1
$region0: #{tpu_custom_call.1}
  #allocation0 [shape = 'u32[]', space=smem, size = 0x4, offset = 0x4, fixed_abs, tag = 'smem constant byte address 0x4 - core index']
  #allocation1 [shape = 'u32[144,128]{1,0:T(1,128)}', space=vmem, size = 0x12000, scoped, tag = 'internal scratch']
  %s0 = inlined_call_operand.hbm [shape: f32[32,640], index: 0, kind: input, shape index: {}]
  %s1 = inlined_call_operand.hbm [shape: f32[8,200], index: 1, kind: input, shape index: {}]
  %s2 = inlined_call_operand.hbm [shape: f32[2,200], index: 2, kind: output, shape index: {}]
  %s3 = sld [smem:[#allocation0]]
  $region49: #{tpu_custom_call.1} parent=0
    _
  %s5 = ssub.s32 1, %s3
  %s6 = scalar_select 0, %s5, %s3
  $region1: #{tpu_custom_call.1} parent=0
    #allocation2 [shape = 'u8[81920]{0}', space=vmem, size = 0x14000, scoped, tag = 'input window, operand 0, single buffered']
    #allocation3 [shape = 's32[2]{0}', space=sflag, size = 0x8, scoped, tag = 'scoped memory for tpu_custom_call.1']
    #allocation4 [shape = 's32[2]{0}', space=sflag, size = 0x8, scoped, tag = 'scoped memory for tpu_custom_call.1']
    #allocation5 [shape = 'u8[8192]{0}', space=vmem, size = 0x2000, scoped, tag = 'input window, operand 1']
    #allocation6 [shape = 's32[2]{0}', space=sflag, size = 0x8, scoped, tag = 'scoped memory for tpu_custom_call.1']
    #allocation7 [shape = 'u8[2048]{0}', space=vmem, size = 0x800, scoped, tag = 'output window, operand 0']
    %7 = vsyncpa [#allocation3], 0
    %8 = vsyncpa [#allocation6], 0
    %s9 = scalar_lea.sflag [#allocation6], 1
    %10 = vsyncpa %s9, 0
    %11 = vsyncpa [#allocation4], 0
    %s12 = scalar_lea.sflag [#allocation4], 1
    %13 = vsyncpa %s12, 0
    loop: start=0, step=1, limit=4
    $region2: #{tpu_custom_call.1} parent=1 // loop_pre_header
      _
    $region3: #{tpu_custom_call.1} parent=1 // loop_header
      %s15 = sphi 0, %s19
      %p16 = scmp.ge.s32.totalorder %s15, 4
      %s23 = sphi 0, %s23
      %s25 = sphi 0, %s23
      %s26 = sphi 0, %s25
      %s40 = sphi 0, %s26
      %s46 = sphi 0, %s48
      %s49 = sphi 0, %s46
      %s50 = sphi 0, %s49
      %s66 = sphi 0, %s50
      %s72 = sphi 0, %s74
      %s75 = sphi 0, %s72
      %s76 = sphi 0, %s75
      %s92 = sphi 0, %s76
    $region4: #{tpu_custom_call.1} parent=1 // loop_header_branch
      %18 = sbr.rel (%p16) target = $region8
    $region5: #{tpu_custom_call.1} parent=1 // loop_body
      %s20 = ssub.s32 %s15, 1
      %s21 = ssub.s32 %s15, 2
      %s22 = sadd.s32 %s15, 1
      %s24 = sadd.s32 %s23, 1
      %p27 = scmp.eq.s32.totalorder %s15, 1
      %p28 = scmp.ne.s32.totalorder %s23, %s25
      %p29 = scmp.eq.s32.totalorder %s15, 0
      %p30 = por %p28, %p29
      %p31 = scmp.ne.s32.totalorder %s23, %s25
      %p32 = scmp.eq.s32.totalorder %s20, 1
      %p33 = por %p31, %p32
      %p34 = scmp.ne.s32.totalorder %s25, %s26
      %p35 = scmp.eq.s32.totalorder %s20, 0
      %p36 = por %p34, %p35
      %p37 = scmp.ne.s32.totalorder %s25, %s26
      %p38 = scmp.eq.s32.totalorder %s21, 1
      %p39 = por %p37, %p38
      %p41 = scmp.ne.s32.totalorder %s26, %s40
      %p42 = scmp.eq.s32.totalorder %s21, 0
      %p43 = por %p41, %p42
      %s44 = ssub.s32 %s15, %s22
      %p45 = scmp.eq.s32.totalorder %s44, 0
      %s47 = sadd.s32 %s46, 1
      %s48 = scalar_select %p45, %s46, %s47
      %p51 = pneg %p45
      %p52 = scmp.eq.s32.totalorder %s15, 1
      %p53 = por %p51, %p52
      %p54 = scmp.ne.s32.totalorder %s46, %s49
      %p55 = scmp.eq.s32.totalorder %s15, 0
      %p56 = por %p54, %p55
      %p57 = scmp.ne.s32.totalorder %s46, %s49
      %p58 = scmp.eq.s32.totalorder %s20, 1
      %p59 = por %p57, %p58
      %p60 = scmp.ne.s32.totalorder %s49, %s50
      %p61 = scmp.eq.s32.totalorder %s20, 0
      %p62 = por %p60, %p61
      %p63 = scmp.ne.s32.totalorder %s49, %s50
      %p64 = scmp.eq.s32.totalorder %s21, 1
      %p65 = por %p63, %p64
      %p67 = scmp.ne.s32.totalorder %s50, %s66
      %p68 = scmp.eq.s32.totalorder %s21, 0
      %p69 = por %p67, %p68
      %s70 = ssub.s32 %s15, %s22
      %p71 = scmp.eq.s32.totalorder %s70, 0
      %s73 = sadd.s32 %s72, 1
      %s74 = scalar_select %p71, %s72, %s73
      %p77 = pneg %p71
      %p78 = scmp.eq.s32.totalorder %s15, 1
      %p79 = por %p77, %p78
      %p80 = scmp.ne.s32.totalorder %s72, %s75
      %p81 = scmp.eq.s32.totalorder %s15, 0
      %p82 = por %p80, %p81
      %p83 = scmp.ne.s32.totalorder %s72, %s75
      %p84 = scmp.eq.s32.totalorder %s20, 1
      %p85 = por %p83, %p84
      %p86 = scmp.ne.s32.totalorder %s75, %s76
      %p87 = scmp.eq.s32.totalorder %s20, 0
      %p88 = por %p86, %p87
      %p89 = scmp.ne.s32.totalorder %s75, %s76
      %p90 = scmp.eq.s32.totalorder %s21, 1
      %p91 = por %p89, %p90
      %p93 = scmp.ne.s32.totalorder %s76, %s92
      %p94 = scmp.eq.s32.totalorder %s21, 0
      %p95 = por %p93, %p94
      %p96 = scmp.le.s32.totalorder 1, %s15
      %p97 = scmp.lt.s32.totalorder %s15, 3
      %p98 = pnand %p96, %p97
      %p99 = pneg %p98
      // Predicated region
      $region9: #{tpu_custom_call.1} parent=5 // pred_check
        _
      $region10: #{tpu_custom_call.1} parent=5 // pred_check_branch
        %101 = sbr.rel (%p98) target = $region12
      $region11: #{tpu_custom_call.1} parent=5 // pred_region
        %s102 = ssub.s32 %s15, 1
        // Predicated region
        $region13: #{tpu_custom_call.1} parent=11 // pred_check
          %p103 = pneg %p36
        $region14: #{tpu_custom_call.1} parent=11 // pred_check_branch
          %105 = sbr.rel (%p103) target = $region16
        $region15: #{tpu_custom_call.1} parent=11 // pred_region
          %s107 = ssub.s32 2560, 2560
          %108 = vsyncadd [#allocation3], %s107
          %s109 = sshll.u32 [#allocation2], 4
          %s110 = int_to_ptr.vmem [resolvable:$true] %s109
          %115 = dma.hbm_to_vmem [thread:$0]  %s0, 2560, %s110, [#allocation3], 640, 640, 40
        $region16: #{tpu_custom_call.1} parent=11 // pred_fallthru
          _
      $region12: #{tpu_custom_call.1} parent=5 // pred_fallthru
        _
      %p116 = scmp.lt.s32.totalorder %s15, 2
      // Predicated region
      $region17: #{tpu_custom_call.1} parent=5 // pred_check
        %p117 = pneg %p116
      $region18: #{tpu_custom_call.1} parent=5 // pred_check_branch
        %119 = sbr.rel (%p117) target = $region20
      $region19: #{tpu_custom_call.1} parent=5 // pred_region
        // Predicated region
        $region21: #{tpu_custom_call.1} parent=19 // pred_check
          %p120 = pneg %p56
        $region22: #{tpu_custom_call.1} parent=19 // pred_check_branch
          %122 = sbr.rel (%p120) target = $region24
        $region23: #{tpu_custom_call.1} parent=19 // pred_region
          %s123 = sand.u32 %s46, 1
          %s124 = scalar_lea.sflag [#allocation6], %s123
          %s125 = sand.u32 %s46, 1
          %s126 = smul.addr %s125, 8
          %s127 = scalar_lea.vmem [#allocation5], %s126
          %s129 = ssub.s32 128, 128
          %130 = vsyncadd %s124, %s129
          %s131 = smul.addr %s15, 128
          %s132 = scalar_lea.hbm %s1, %s131
          %s134 = sshll.u32 %s127, 4
          %s135 = int_to_ptr.vmem [resolvable:$true] %s134
          %137 = dma.hbm_to_vmem [thread:$0]  %s132, 128, %s135, %s124
        $region24: #{tpu_custom_call.1} parent=19 // pred_fallthru
          _
      $region20: #{tpu_custom_call.1} parent=5 // pred_fallthru
        _
      %p138 = scmp.le.s32.totalorder 1, %s15
      %p139 = scmp.lt.s32.totalorder %s15, 3
      %p140 = pnand %p138, %p139
      %p141 = pneg %p140
      // Predicated region
      $region25: #{tpu_custom_call.1} parent=5 // pred_check
        _
      $region26: #{tpu_custom_call.1} parent=5 // pred_check_branch
        %143 = sbr.rel (%p140) target = $region28
      $region27: #{tpu_custom_call.1} parent=5 // pred_region
        %s144 = ssub.s32 %s15, 1
        // Predicated region
        $region29: #{tpu_custom_call.1} parent=27 // pred_check
          %p145 = pneg %p36
        $region30: #{tpu_custom_call.1} parent=27 // pred_check_branch
          %147 = sbr.rel (%p145) target = $region32
        $region31: #{tpu_custom_call.1} parent=27 // pred_region
          %148 = dma.done [#allocation3], 2560
        $region32: #{tpu_custom_call.1} parent=27 // pred_fallthru
          _
        %s149 = sand.u32 %s49, 1
        %s150 = scalar_lea.sflag [#allocation6], %s149
        %s151 = sand.u32 %s49, 1
        %s152 = smul.addr %s151, 8
        %s153 = scalar_lea.vmem [#allocation5], %s152
        // Predicated region
        $region33: #{tpu_custom_call.1} parent=27 // pred_check
          %p154 = pneg %p62
        $region34: #{tpu_custom_call.1} parent=27 // pred_check_branch
          %156 = sbr.rel (%p154) target = $region36
        $region35: #{tpu_custom_call.1} parent=27 // pred_region
          %157 = dma.done %s150, 128
        $region36: #{tpu_custom_call.1} parent=27 // pred_fallthru
          _
        %p158 = pneg %p36
        %p159 = pneg %p33
        %s160 = sand.u32 %s49, 1
        %s161 = scalar_lea.sflag [#allocation6], %s160
        %s162 = sand.u32 %s49, 1
        %s163 = smul.addr %s162, 8
        %s164 = scalar_lea.vmem [#allocation5], %s163
        %p165 = pneg %p62
        %p166 = pneg %p59
        %p167 = pneg %p88
        %p168 = pneg %p85
        %s169 = sand.u32 %s75, 1
        %s170 = scalar_lea.sflag [#allocation4], %s169
        %s171 = sand.u32 %s75, 1
        %s172 = smul.addr %s171, 2
        %s173 = scalar_lea.vmem [#allocation7], %s172
        %v174 = vld [vmem:[%s153] sm:$0xff]
        %v175 = vld [vmem:[#allocation2] sm:$0xff]
        %v176 = vld [vmem:[#allocation2 + $0x28] sm:$0xff]
        %v177 = vld [vmem:[#allocation2 + $0x50] sm:$0xff]
        %v178 = vld [vmem:[#allocation2 + $0x78] sm:$0xff]
        %v179 = vld [vmem:[#allocation2 + $0x8] sm:$0xff]
        %v180 = vld [vmem:[#allocation2 + $0x30] sm:$0xff]
        %v181 = vld [vmem:[#allocation2 + $0x10] sm:$0xff]
        %v182 = vld [vmem:[#allocation2 + $0x38] sm:$0xff]
        %v183 = vld [vmem:[#allocation2 + $0x18] sm:$0x3]
        %v184 = vld [vmem:[#allocation2 + $0x20] sm:$0x3]
        %vm185 = vcmask 64512
        %v187 = vsel %vm185, %v175, 0
        %v190 = vsel %vm185, %v176, 0
        %v193 = vsel %vm185, %v177, 0
        %v196 = vsel %vm185, %v178, 0
        %198 = vmatprep.subr.mxu0 0.0
        %199 = vmatpush1.msra.mxu0 0.0
        %200 = vmatprep.subr.mxu0 0.0
        %201 = vmatpush1.msra.mxu0 0.0
        %202 = vmatprep.subr.mxu0 0.0
        %203 = vmatpush1.msra.mxu0 0.0
        %204 = vmatprep.subr.mxu0 0.0
        %205 = vmatpush1.msra.mxu0 0.0
        %206 = vmatprep.subr.mxu0 0.0
        %207 = vmatpush1.msra.mxu0 0.0
        %208 = vmatprep.subr.mxu0 0.0
        %209 = vmatpush1.msra.mxu0 0.0
        %210 = vmatprep.subr.mxu0 0.0
        %211 = vmatpush1.msra.mxu0 0.0
        %212 = vmatprep.subr.mxu0 0.0
        %213 = vmatpush1.msra.mxu0 0.0
        %214 = vmatprep.subr.mxu0 0.0
        %215 = vmatpush1.msra.mxu0 0.0
        %216 = vmatprep.subr.mxu0 0.0
        %217 = vmatpush1.msra.mxu0 0.0
        %218 = vmatprep.subr.mxu0 0.0
        %219 = vmatpush1.msra.mxu0 0.0
        %220 = vmatprep.subr.mxu0 0.0
        %221 = vmatpush1.msra.mxu0 0.0
        %222 = vmatprep.subr.mxu0 0.0
        %223 = vmatpush1.msra.mxu0 0.0
        %224 = vmatprep.subr.mxu0 0.0
        %225 = vmatpush1.msra.mxu0 0.0
        %226 = vmatprep.subr.mxu0 0.0
        %227 = vmatpush1.msra.mxu0 0.0
        %228 = vmatprep.subr.mxu0 0.0
        %229 = vmatpush1.msra.mxu0 %v174
        %230 = vmatprep.subr.mxu0 0.0
        %231 = vmatpush2.msra.mxu0 0.0
        %232 = vmatprep.subr.mxu0 0.0
        %233 = vmatpush2.msra.mxu0 0.0
        %234 = vmatprep.subr.mxu0 0.0
        %235 = vmatpush2.msra.mxu0 0.0
        %236 = vmatprep.subr.mxu0 0.0
        %237 = vmatpush2.msra.mxu0 0.0
        %238 = vmatprep.subr.mxu0 0.0
        %239 = vmatpush2.msra.mxu0 0.0
        %240 = vmatprep.subr.mxu0 0.0
        %241 = vmatpush2.msra.mxu0 0.0
        %242 = vmatprep.subr.mxu0 0.0
        %243 = vmatpush2.msra.mxu0 0.0
        %244 = vmatprep.subr.mxu0 0.0
        %245 = vmatpush2.msra.mxu0 0.0
        %246 = vmatprep.subr.mxu0 0.0
        %247 = vmatpush2.msra.mxu0 0.0
        %248 = vmatprep.subr.mxu0 0.0
        %249 = vmatpush2.msra.mxu0 0.0
        %250 = vmatprep.subr.mxu0 0.0
        %251 = vmatpush2.msra.mxu0 0.0
        %252 = vmatprep.subr.mxu0 0.0
        %253 = vmatpush2.msra.mxu0 0.0
        %254 = vmatprep.subr.mxu0 0.0
        %255 = vmatpush2.msra.mxu0 0.0
        %256 = vmatprep.subr.mxu0 0.0
        %257 = vmatpush2.msra.mxu0 0.0
        %258 = vmatprep.subr.mxu0 0.0
        %259 = vmatpush2.msra.mxu0 0.0
        %260 = vmatprep.subr.mxu0 0.0
        %261 = vmatpush2.msra.mxu0 0.0
        %262 = vmatprep.mubr.f32.mxu0 0.0
        %263 = vmatmul.mubr.f32.gmra.mxu0 %v187
        %v264 = vpop.f32.mrf.mxu0
        %v265 = vadd.f32 0.0, %v264
        %v266 = vpop.f32.mrf.mxu0
        %267 = vmatprep.mubr.f32.mxu0 0.0
        %268 = vmatmul.mubr.f32.gmra.mxu0 %v190
        %v269 = vpop.f32.mrf.mxu0
        %v270 = vadd.f32 0.0, %v269
        %v271 = vpop.f32.mrf.mxu0
        %272 = vmatprep.mubr.f32.mxu0 0.0
        %273 = vmatmul.mubr.f32.gmra.mxu0 %v193
        %v274 = vpop.f32.mrf.mxu0
        %v275 = vadd.f32 0.0, %v274
        %v276 = vpop.f32.mrf.mxu0
        %277 = vmatprep.mubr.f32.mxu0 0.0
        %278 = vmatmul.mubr.f32.gmra.mxu0 %v196
        %v279 = vpop.f32.mrf.mxu0
        %v280 = vadd.f32 0.0, %v279
        %v281 = vpop.f32.mrf.mxu0
        %282 = vdwg.mxu0
        %v283 = vtanh.pop %v265
        %v284 = vtanh.pop %v270
        %v285 = vtanh.pop %v275
        %v286 = vtanh.pop %v280
        %288 = vset.pattern.permute.xlu0 0
        %289 = vperm.xlu0 %288, %v181
        %v290 = vpop.permute.xlu0 %289
        %293 = vset.pattern.permute.xlu0 0
        %294 = vperm.xlu0 %293, %v182
        %v295 = vpop.permute.xlu0 %294
        %vm297 = vcmask 261120
        %v299 = vsel %vm297, %v179, 0
        %v302 = vsel %vm297, %v180, 0
        %304 = vmatprep.subr.mxu0 0.0
        %305 = vmatpush1.msra.mxu0 0.0
        %306 = vmatprep.subr.mxu0 0.0
        %307 = vmatpush1.msra.mxu0 0.0
        %308 = vmatprep.subr.mxu0 0.0
        %309 = vmatpush1.msra.mxu0 0.0
        %310 = vmatprep.subr.mxu0 0.0
        %311 = vmatpush1.msra.mxu0 0.0
        %312 = vmatprep.subr.mxu0 0.0
        %313 = vmatpush1.msra.mxu0 0.0
        %314 = vmatprep.subr.mxu0 0.0
        %315 = vmatpush1.msra.mxu0 0.0
        %316 = vmatprep.subr.mxu0 0.0
        %317 = vmatpush1.msra.mxu0 0.0
        %318 = vmatprep.subr.mxu0 0.0
        %319 = vmatpush1.msra.mxu0 0.0
        %320 = vmatprep.subr.mxu0 0.0
        %321 = vmatpush1.msra.mxu0 0.0
        %322 = vmatprep.subr.mxu0 0.0
        %323 = vmatpush1.msra.mxu0 0.0
        %324 = vmatprep.subr.mxu0 0.0
        %325 = vmatpush1.msra.mxu0 0.0
        %326 = vmatprep.subr.mxu0 0.0
        %327 = vmatpush1.msra.mxu0 0.0
        %328 = vmatprep.subr.mxu0 0.0
        %329 = vmatpush1.msra.mxu0 %v286
        %330 = vmatprep.subr.mxu0 0.0
        %331 = vmatpush1.msra.mxu0 %v285
        %332 = vmatprep.subr.mxu0 0.0
        %333 = vmatpush1.msra.mxu0 %v284
        %334 = vmatprep.subr.mxu0 0.0
        %335 = vmatpush1.msra.mxu0 %v283
        %336 = vmatprep.subr.mxu0 0.0
        %337 = vmatpush2.msra.mxu0 0.0
        %338 = vmatprep.subr.mxu0 0.0
        %339 = vmatpush2.msra.mxu0 0.0
        %340 = vmatprep.subr.mxu0 0.0
        %341 = vmatpush2.msra.mxu0 0.0
        %342 = vmatprep.subr.mxu0 0.0
        %343 = vmatpush2.msra.mxu0 0.0
        %344 = vmatprep.subr.mxu0 0.0
        %345 = vmatpush2.msra.mxu0 0.0
        %346 = vmatprep.subr.mxu0 0.0
        %347 = vmatpush2.msra.mxu0 0.0
        %348 = vmatprep.subr.mxu0 0.0
        %349 = vmatpush2.msra.mxu0 0.0
        %350 = vmatprep.subr.mxu0 0.0
        %351 = vmatpush2.msra.mxu0 0.0
        %352 = vmatprep.subr.mxu0 0.0
        %353 = vmatpush2.msra.mxu0 0.0
        %354 = vmatprep.subr.mxu0 0.0
        %355 = vmatpush2.msra.mxu0 0.0
        %356 = vmatprep.subr.mxu0 0.0
        %357 = vmatpush2.msra.mxu0 0.0
        %358 = vmatprep.subr.mxu0 0.0
        %359 = vmatpush2.msra.mxu0 0.0
        %360 = vmatprep.subr.mxu0 0.0
        %361 = vmatpush2.msra.mxu0 0.0
        %362 = vmatprep.subr.mxu0 0.0
        %363 = vmatpush2.msra.mxu0 0.0
        %364 = vmatprep.subr.mxu0 0.0
        %365 = vmatpush2.msra.mxu0 0.0
        %366 = vmatprep.subr.mxu0 0.0
        %367 = vmatpush2.msra.mxu0 0.0
        %368 = vmatprep.mubr.f32.mxu0 0.0
        %369 = vmatmul.mubr.f32.gmra.mxu0 %v299
        %v370 = vpop.f32.mrf.mxu0
        %v371 = vadd.f32 %v290, %v370
        %v372 = vpop.f32.mrf.mxu0
        %373 = vmatprep.mubr.f32.mxu0 0.0
        %374 = vmatmul.mubr.f32.gmra.mxu0 %v302
        %v375 = vpop.f32.mrf.mxu0
        %v376 = vadd.f32 %v295, %v375
        %v377 = vpop.f32.mrf.mxu0
        %378 = vdwg.mxu0
        %v379 = vtanh.pop %v371
        %v380 = vtanh.pop %v376
        %382 = vset.pattern.permute.xlu0 0
        %383 = vperm.xlu0 %382, %v184
        %v384 = vpop.permute.xlu0 %383
        %vm386 = vcmask 130048
        %v388 = vsel %vm386, %v183, 0
        %390 = vmatprep.subr.mxu0 0.0
        %391 = vmatpush1.msra.mxu0 0.0
        %392 = vmatprep.subr.mxu0 0.0
        %393 = vmatpush1.msra.mxu0 0.0
        %394 = vmatprep.subr.mxu0 0.0
        %395 = vmatpush1.msra.mxu0 0.0
        %396 = vmatprep.subr.mxu0 0.0
        %397 = vmatpush1.msra.mxu0 0.0
        %398 = vmatprep.subr.mxu0 0.0
        %399 = vmatpush1.msra.mxu0 0.0
        %400 = vmatprep.subr.mxu0 0.0
        %401 = vmatpush1.msra.mxu0 0.0
        %402 = vmatprep.subr.mxu0 0.0
        %403 = vmatpush1.msra.mxu0 0.0
        %404 = vmatprep.subr.mxu0 0.0
        %405 = vmatpush1.msra.mxu0 0.0
        %406 = vmatprep.subr.mxu0 0.0
        %407 = vmatpush1.msra.mxu0 0.0
        %408 = vmatprep.subr.mxu0 0.0
        %409 = vmatpush1.msra.mxu0 0.0
        %410 = vmatprep.subr.mxu0 0.0
        %411 = vmatpush1.msra.mxu0 0.0
        %412 = vmatprep.subr.mxu0 0.0
        %413 = vmatpush1.msra.mxu0 0.0
        %414 = vmatprep.subr.mxu0 0.0
        %415 = vmatpush1.msra.mxu0 0.0
        %416 = vmatprep.subr.mxu0 0.0
        %417 = vmatpush1.msra.mxu0 0.0
        %418 = vmatprep.subr.mxu0 0.0
        %419 = vmatpush1.msra.mxu0 %v380
        %420 = vmatprep.subr.mxu0 0.0
        %421 = vmatpush1.msra.mxu0 %v379
        %422 = vmatprep.subr.mxu0 0.0
        %423 = vmatpush2.msra.mxu0 0.0
        %424 = vmatprep.subr.mxu0 0.0
        %425 = vmatpush2.msra.mxu0 0.0
        %426 = vmatprep.subr.mxu0 0.0
        %427 = vmatpush2.msra.mxu0 0.0
        %428 = vmatprep.subr.mxu0 0.0
        %429 = vmatpush2.msra.mxu0 0.0
        %430 = vmatprep.subr.mxu0 0.0
        %431 = vmatpush2.msra.mxu0 0.0
        %432 = vmatprep.subr.mxu0 0.0
        %433 = vmatpush2.msra.mxu0 0.0
        %434 = vmatprep.subr.mxu0 0.0
        %435 = vmatpush2.msra.mxu0 0.0
        %436 = vmatprep.subr.mxu0 0.0
        %437 = vmatpush2.msra.mxu0 0.0
        %438 = vmatprep.subr.mxu0 0.0
        %439 = vmatpush2.msra.mxu0 0.0
        %440 = vmatprep.subr.mxu0 0.0
        %441 = vmatpush2.msra.mxu0 0.0
        %442 = vmatprep.subr.mxu0 0.0
        %443 = vmatpush2.msra.mxu0 0.0
        %444 = vmatprep.subr.mxu0 0.0
        %445 = vmatpush2.msra.mxu0 0.0
        %446 = vmatprep.subr.mxu0 0.0
        %447 = vmatpush2.msra.mxu0 0.0
        %448 = vmatprep.subr.mxu0 0.0
        %449 = vmatpush2.msra.mxu0 0.0
        %450 = vmatprep.subr.mxu0 0.0
        %451 = vmatpush2.msra.mxu0 0.0
        %452 = vmatprep.subr.mxu0 0.0
        %453 = vmatpush2.msra.mxu0 0.0
        %454 = vmatprep.mubr.f32.mxu0 0.0
        %455 = vmatmul.mubr.f32.gmra.mxu0 %v388
        %v456 = vpop.f32.mrf.mxu0
        %v457 = vadd.f32 %v384, %v456
        %v458 = vpop.f32.mrf.mxu0
        %459 = vdwg.mxu0
        %v460 = vxor.u32 %v457, 2147483648
        %v461 = vmul.f32 %v460, 1.442695
        %v462 = vpow.pop %v461
        %v463 = vadd.f32 %v462, 1.0
        %v464 = vrcp.pop %v463
        %v465 = vmul.f32 1.0, %v464
        %466 = vst [vmem:[%s173] sm:$0x3] %v465
        %s467 = sand.u32 %s75, 1
        %s468 = scalar_lea.sflag [#allocation4], %s467
        %s469 = sand.u32 %s75, 1
        %s470 = smul.addr %s469, 2
        %s471 = scalar_lea.vmem [#allocation7], %s470
        // Predicated region
        $region37: #{tpu_custom_call.1} parent=27 // pred_check
          %p472 = pneg %p85
        $region38: #{tpu_custom_call.1} parent=27 // pred_check_branch
          %474 = sbr.rel (%p472) target = $region40
        $region39: #{tpu_custom_call.1} parent=27 // pred_region
          %s476 = ssub.s32 32, 32
          %477 = vsyncadd %s468, %s476
          %s478 = smul.addr %s20, 32
          %s479 = scalar_lea.hbm %s2, %s478
          %s481 = sshll.u32 %s471, 4
          %s482 = int_to_ptr.vmem [resolvable:$true] %s481
          %484 = dma.vmem_to_hbm [thread:$0]  %s482, 32, %s479, %s468
        $region40: #{tpu_custom_call.1} parent=27 // pred_fallthru
          _
      $region28: #{tpu_custom_call.1} parent=5 // pred_fallthru
        _
      %p485 = scmp.le.s32.totalorder 2, %s15
      // Predicated region
      $region41: #{tpu_custom_call.1} parent=5 // pred_check
        %p486 = pneg %p485
      $region42: #{tpu_custom_call.1} parent=5 // pred_check_branch
        %488 = sbr.rel (%p486) target = $region44
      $region43: #{tpu_custom_call.1} parent=5 // pred_region
        %s489 = ssub.s32 %s15, 2
        // Predicated region
        $region45: #{tpu_custom_call.1} parent=43 // pred_check
          %p490 = pneg %p91
        $region46: #{tpu_custom_call.1} parent=43 // pred_check_branch
          %492 = sbr.rel (%p490) target = $region48
        $region47: #{tpu_custom_call.1} parent=43 // pred_region
          %s493 = sand.u32 %s76, 1
          %s494 = scalar_lea.sflag [#allocation4], %s493
          %s495 = sand.u32 %s76, 1
          %s496 = smul.addr %s495, 2
          %s497 = scalar_lea.vmem [#allocation7], %s496
          %498 = dma.done %s494, 32
        $region48: #{tpu_custom_call.1} parent=43 // pred_fallthru
          _
      $region44: #{tpu_custom_call.1} parent=5 // pred_fallthru
        _
    $region6: #{tpu_custom_call.1} parent=1 // loop_footer
      %s19 = sadd.s32 1, %s15
    $region7: #{tpu_custom_call.1} parent=1 // loop_footer_branch
      %14 = sbr.rel target = $region3
    $region8: #{tpu_custom_call.1} parent=1 // loop_exit
      _
    %499 = vsyncpa [#allocation3], 1
    %s500 = scalar_lea.sflag [#allocation3], 1
    %501 = vsyncpa %s500, 1
    %502 = vsyncpa [#allocation6], 1
    %s503 = scalar_lea.sflag [#allocation6], 1
    %504 = vsyncpa %s503, 1
    %505 = vsyncpa [#allocation4], 1
    %s506 = scalar_lea.sflag [#allocation4], 1
    %507 = vsyncpa %s506, 1

</llo_original>
